<compile_context>
chip_gen: v6e
topology: v6e:2x2x1
jax: 0.10.0
libtpu: 0.0.40
codegen_flags: <defaults>
</compile_context>

<pallas_src>
import jax
import jax.numpy as jnp
import numpy as np
from jax.experimental import pallas as pl
from jax.experimental.pallas import tpu as pltpu


def weighted_sum_kernel(w_ref, x_ref, o_ref):
    # w_ref: SMEM (L,) f32        -- per-layer weights with gamma folded in
    # x_ref: VMEM (L, tile_T, Ld) -- all L layer tiles for this token tile
    # o_ref: VMEM (tile_T, Ld)    -- output tile
    L = x_ref.shape[0]
    # Fully-unrolled (L=12) FMA chain; stays register/vreg-resident per pass,
    # one store per output tile.  Kernel is HBM-bound, VPU has huge slack.
    acc = x_ref[0].astype(jnp.float32) * w_ref[0]
    for l in range(1, L):
        acc = acc + x_ref[l].astype(jnp.float32) * w_ref[l]
    o_ref[...] = acc.astype(o_ref.dtype)


def _choose_tile_t(T, Ld, L, in_isz, out_isz, row_align, budget_bytes):
    """Rows per grid step, from a total double-buffered VMEM budget."""
    # Per-row, double-buffered: 2 * L * Ld * in_isz (input block)
    #                         + 2 * Ld * out_isz    (output tile)
    bytes_per_row = Ld * (2 * L * in_isz + 2 * out_isz)
    tile = budget_bytes // bytes_per_row
    tile = max(row_align, (tile // row_align) * row_align)
    if tile >= T:
        # Whole problem fits one tile.  Split into >=2 steps so the
        # "parallel" grid axis can be sharded across both TCs (v7x megacore).
        if T >= 2 * row_align:
            half = (T + 1) // 2
            tile = ((half + row_align - 1) // row_align) * row_align
        else:
            tile = T  # tiny input: single full-extent tile
    return tile


def bert_weighted_embed(layers, bert_weights, bert_gamma,
                        vmem_budget_bytes=40 << 20):
    """layers: [L, B, S, H] float (f32 or bf16), bert_weights: [L,1], bert_gamma: [1,1]."""
    L, B, S, H = layers.shape
    in_isz = jnp.dtype(layers.dtype).itemsize
    out_isz = in_isz
    row_align = 16 if in_isz == 2 else 8  # bf16 sublane packing

    # Fold gamma into the 12 layer weights (free scalar work in the wrapper).
    w_eff = (jnp.asarray(bert_gamma, jnp.float32).reshape(()) *
             jnp.asarray(bert_weights, jnp.float32).reshape(-1))  # (L,)

    # Lane-dense flatten of (B, S, H); pad to a multiple of 128 if needed so
    # the kernel never emits masked sub-128-lane loads/stores.
    total = B * S * H
    if H % 128 == 0:
        T, Ld = B * S, H
        x = layers.reshape(L, T, Ld)
        pad = 0
    else:
        Ld = 128
        padded = ((total + 127) // 128) * 128
        pad = padded - total
        flat = layers.reshape(L, total)
        if pad:
            flat = jnp.pad(flat, ((0, 0), (0, pad)))
        T = padded // Ld
        x = flat.reshape(L, T, Ld)

    tile_T = _choose_tile_t(T, Ld, L, in_isz, out_isz, row_align,
                            vmem_budget_bytes)
    grid = (pl.cdiv(T, tile_T),)

    # Actual double-buffered footprint of the chosen blocks (+ slack).
    footprint = tile_T * Ld * (2 * L * in_isz + 2 * out_isz)
    vmem_limit = max(32 << 20, footprint + (4 << 20))

    cost = pl.CostEstimate(
        flops=2 * L * T * Ld,
        transcendentals=0,
        bytes_accessed=(L * in_isz + out_isz) * T * Ld,
    )

    out2d = pl.pallas_call(
        weighted_sum_kernel,
        out_shape=jax.ShapeDtypeStruct((T, Ld), layers.dtype),
        grid_spec=pltpu.PrefetchScalarGridSpec(
            num_scalar_prefetch=0,
            grid=grid,
            in_specs=[
                # 1-D scalar weights in SMEM (cheap scalar-indexed reads).
                pl.BlockSpec(memory_space=pltpu.MemorySpace.SMEM),
                # All L layers of one token tile per grid step.
                pl.BlockSpec((L, tile_T, Ld), lambda t: (0, t, 0)),
            ],
            out_specs=pl.BlockSpec((tile_T, Ld), lambda t: (t, 0)),
        ),
        compiler_params=pltpu.CompilerParams(
            dimension_semantics=("parallel",),
            vmem_limit_bytes=vmem_limit,
        ),
        cost_estimate=cost,
    )(w_eff, x)

    if pad:
        return out2d.reshape(-1)[:total].reshape(B, S, H)
    return out2d.reshape(B, S, H)


if __name__ == "__main__":
    L, B, S, H = 12, 2, 8, 32  # 12 BERT layers, small synthetic hidden size

    key = jax.random.PRNGKey(0)
    k_layers, k_w, k_g = jax.random.split(key, 3)

    # Synthetic stand-in for all_encoder_layers from the wrapped BertModel.
    layers = jax.random.normal(k_layers, (L, B, S, H), dtype=jnp.float32)

    # Deterministic xavier_normal-style init: std = sqrt(2 / (fan_in + fan_out))
    bert_weights = (jax.random.normal(k_w, (L, 1), dtype=jnp.float32)
                    * np.sqrt(2.0 / (L + 1)).astype(np.float32))
    bert_gamma = (jax.random.normal(k_g, (1, 1), dtype=jnp.float32)
                  * np.sqrt(2.0 / 2.0).astype(np.float32))

    out = bert_weighted_embed(layers, bert_weights, bert_gamma)
    out = jax.block_until_ready(out)

    # Pure-JAX reference of the PyTorch forward (bert_mode='weighted')
    ref = bert_gamma[0, 0] * jnp.sum(
        layers * bert_weights[:, :, None, None], axis=0)
    np.testing.assert_allclose(np.asarray(out), np.asarray(ref),
                               rtol=1e-5, atol=1e-5)

    print("KERNEL_OK")
</pallas_src>

<mosaic_0001>
module attributes {stable_mosaic.version = 11 : i64} {
  func.func @weighted_sum_kernel(%arg0: i32, %arg1: memref<12xf32, #tpu.memory_space<smem>>, %arg2: memref<12x4x128xf32, #tpu.memory_space<vmem>>, %arg3: memref<4x128xf32, #tpu.memory_space<vmem>>) attributes {dimension_semantics = [#tpu.dimension_semantics<parallel>], iteration_bounds = array<i64: 1>, scalar_prefetch = 0 : i64, scratch_operands = 0 : i64, tpu.core_type = #tpu.core_type<tc>, window_params = [{transform_indices = @transform_0, window_bounds = array<i64: 12>}, {transform_indices = @transform_1, window_bounds = array<i64: 12, 4, 128>}, {transform_indices = @transform_2, window_bounds = array<i64: 4, 128>}]} {
    %c0 = arith.constant 0 : index
    %c0_0 = arith.constant 0 : index
    %c0_1 = arith.constant 0 : index
    %0 = vector.load %arg2[%c0, %c0_0, %c0_1] : memref<12x4x128xf32, #tpu.memory_space<vmem>>, vector<1x4x128xf32>
    %1 = vector.shape_cast %0 : vector<1x4x128xf32> to vector<4x128xf32>
    %c0_2 = arith.constant 0 : index
    %2 = memref.load %arg1[%c0_2] : memref<12xf32, #tpu.memory_space<smem>>
    %3 = vector.broadcast %2 : f32 to vector<4x128xf32>
    %4 = arith.mulf %1, %3 : vector<4x128xf32>
    %c1 = arith.constant 1 : index
    %c0_3 = arith.constant 0 : index
    %c0_4 = arith.constant 0 : index
    %5 = vector.load %arg2[%c1, %c0_3, %c0_4] : memref<12x4x128xf32, #tpu.memory_space<vmem>>, vector<1x4x128xf32>
    %6 = vector.shape_cast %5 : vector<1x4x128xf32> to vector<4x128xf32>
    %c1_5 = arith.constant 1 : index
    %7 = memref.load %arg1[%c1_5] : memref<12xf32, #tpu.memory_space<smem>>
    %8 = vector.broadcast %7 : f32 to vector<4x128xf32>
    %9 = arith.mulf %6, %8 : vector<4x128xf32>
    %10 = arith.addf %4, %9 : vector<4x128xf32>
    %c2 = arith.constant 2 : index
    %c0_6 = arith.constant 0 : index
    %c0_7 = arith.constant 0 : index
    %11 = vector.load %arg2[%c2, %c0_6, %c0_7] : memref<12x4x128xf32, #tpu.memory_space<vmem>>, vector<1x4x128xf32>
    %12 = vector.shape_cast %11 : vector<1x4x128xf32> to vector<4x128xf32>
    %c2_8 = arith.constant 2 : index
    %13 = memref.load %arg1[%c2_8] : memref<12xf32, #tpu.memory_space<smem>>
    %14 = vector.broadcast %13 : f32 to vector<4x128xf32>
    %15 = arith.mulf %12, %14 : vector<4x128xf32>
    %16 = arith.addf %10, %15 : vector<4x128xf32>
    %c3 = arith.constant 3 : index
    %c0_9 = arith.constant 0 : index
    %c0_10 = arith.constant 0 : index
    %17 = vector.load %arg2[%c3, %c0_9, %c0_10] : memref<12x4x128xf32, #tpu.memory_space<vmem>>, vector<1x4x128xf32>
    %18 = vector.shape_cast %17 : vector<1x4x128xf32> to vector<4x128xf32>
    %c3_11 = arith.constant 3 : index
    %19 = memref.load %arg1[%c3_11] : memref<12xf32, #tpu.memory_space<smem>>
    %20 = vector.broadcast %19 : f32 to vector<4x128xf32>
    %21 = arith.mulf %18, %20 : vector<4x128xf32>
    %22 = arith.addf %16, %21 : vector<4x128xf32>
    %c4 = arith.constant 4 : index
    %c0_12 = arith.constant 0 : index
    %c0_13 = arith.constant 0 : index
    %23 = vector.load %arg2[%c4, %c0_12, %c0_13] : memref<12x4x128xf32, #tpu.memory_space<vmem>>, vector<1x4x128xf32>
    %24 = vector.shape_cast %23 : vector<1x4x128xf32> to vector<4x128xf32>
    %c4_14 = arith.constant 4 : index
    %25 = memref.load %arg1[%c4_14] : memref<12xf32, #tpu.memory_space<smem>>
    %26 = vector.broadcast %25 : f32 to vector<4x128xf32>
    %27 = arith.mulf %24, %26 : vector<4x128xf32>
    %28 = arith.addf %22, %27 : vector<4x128xf32>
    %c5 = arith.constant 5 : index
    %c0_15 = arith.constant 0 : index
    %c0_16 = arith.constant 0 : index
    %29 = vector.load %arg2[%c5, %c0_15, %c0_16] : memref<12x4x128xf32, #tpu.memory_space<vmem>>, vector<1x4x128xf32>
    %30 = vector.shape_cast %29 : vector<1x4x128xf32> to vector<4x128xf32>
    %c5_17 = arith.constant 5 : index
    %31 = memref.load %arg1[%c5_17] : memref<12xf32, #tpu.memory_space<smem>>
    %32 = vector.broadcast %31 : f32 to vector<4x128xf32>
    %33 = arith.mulf %30, %32 : vector<4x128xf32>
    %34 = arith.addf %28, %33 : vector<4x128xf32>
    %c6 = arith.constant 6 : index
    %c0_18 = arith.constant 0 : index
    %c0_19 = arith.constant 0 : index
    %35 = vector.load %arg2[%c6, %c0_18, %c0_19] : memref<12x4x128xf32, #tpu.memory_space<vmem>>, vector<1x4x128xf32>
    %36 = vector.shape_cast %35 : vector<1x4x128xf32> to vector<4x128xf32>
    %c6_20 = arith.constant 6 : index
    %37 = memref.load %arg1[%c6_20] : memref<12xf32, #tpu.memory_space<smem>>
    %38 = vector.broadcast %37 : f32 to vector<4x128xf32>
    %39 = arith.mulf %36, %38 : vector<4x128xf32>
    %40 = arith.addf %34, %39 : vector<4x128xf32>
    %c7 = arith.constant 7 : index
    %c0_21 = arith.constant 0 : index
    %c0_22 = arith.constant 0 : index
    %41 = vector.load %arg2[%c7, %c0_21, %c0_22] : memref<12x4x128xf32, #tpu.memory_space<vmem>>, vector<1x4x128xf32>
    %42 = vector.shape_cast %41 : vector<1x4x128xf32> to vector<4x128xf32>
    %c7_23 = arith.constant 7 : index
    %43 = memref.load %arg1[%c7_23] : memref<12xf32, #tpu.memory_space<smem>>
    %44 = vector.broadcast %43 : f32 to vector<4x128xf32>
    %45 = arith.mulf %42, %44 : vector<4x128xf32>
    %46 = arith.addf %40, %45 : vector<4x128xf32>
    %c8 = arith.constant 8 : index
    %c0_24 = arith.constant 0 : index
    %c0_25 = arith.constant 0 : index
    %47 = vector.load %arg2[%c8, %c0_24, %c0_25] : memref<12x4x128xf32, #tpu.memory_space<vmem>>, vector<1x4x128xf32>
    %48 = vector.shape_cast %47 : vector<1x4x128xf32> to vector<4x128xf32>
    %c8_26 = arith.constant 8 : index
    %49 = memref.load %arg1[%c8_26] : memref<12xf32, #tpu.memory_space<smem>>
    %50 = vector.broadcast %49 : f32 to vector<4x128xf32>
    %51 = arith.mulf %48, %50 : vector<4x128xf32>
    %52 = arith.addf %46, %51 : vector<4x128xf32>
    %c9 = arith.constant 9 : index
    %c0_27 = arith.constant 0 : index
    %c0_28 = arith.constant 0 : index
    %53 = vector.load %arg2[%c9, %c0_27, %c0_28] : memref<12x4x128xf32, #tpu.memory_space<vmem>>, vector<1x4x128xf32>
    %54 = vector.shape_cast %53 : vector<1x4x128xf32> to vector<4x128xf32>
    %c9_29 = arith.constant 9 : index
    %55 = memref.load %arg1[%c9_29] : memref<12xf32, #tpu.memory_space<smem>>
    %56 = vector.broadcast %55 : f32 to vector<4x128xf32>
    %57 = arith.mulf %54, %56 : vector<4x128xf32>
    %58 = arith.addf %52, %57 : vector<4x128xf32>
    %c10 = arith.constant 10 : index
    %c0_30 = arith.constant 0 : index
    %c0_31 = arith.constant 0 : index
    %59 = vector.load %arg2[%c10, %c0_30, %c0_31] : memref<12x4x128xf32, #tpu.memory_space<vmem>>, vector<1x4x128xf32>
    %60 = vector.shape_cast %59 : vector<1x4x128xf32> to vector<4x128xf32>
    %c10_32 = arith.constant 10 : index
    %61 = memref.load %arg1[%c10_32] : memref<12xf32, #tpu.memory_space<smem>>
    %62 = vector.broadcast %61 : f32 to vector<4x128xf32>
    %63 = arith.mulf %60, %62 : vector<4x128xf32>
    %64 = arith.addf %58, %63 : vector<4x128xf32>
    %c11 = arith.constant 11 : index
    %c0_33 = arith.constant 0 : index
    %c0_34 = arith.constant 0 : index
    %65 = vector.load %arg2[%c11, %c0_33, %c0_34] : memref<12x4x128xf32, #tpu.memory_space<vmem>>, vector<1x4x128xf32>
    %66 = vector.shape_cast %65 : vector<1x4x128xf32> to vector<4x128xf32>
    %c11_35 = arith.constant 11 : index
    %67 = memref.load %arg1[%c11_35] : memref<12xf32, #tpu.memory_space<smem>>
    %68 = vector.broadcast %67 : f32 to vector<4x128xf32>
    %69 = arith.mulf %66, %68 : vector<4x128xf32>
    %70 = arith.addf %64, %69 : vector<4x128xf32>
    %c0_36 = arith.constant 0 : index
    %c0_37 = arith.constant 0 : index
    %71 = vector.load %arg3[%c0_36, %c0_37] : memref<4x128xf32, #tpu.memory_space<vmem>>, vector<4x128xf32>
    tpu.vector_store %arg3[%c0_36, %c0_37], %70 {strides = array<i32>} : memref<4x128xf32, #tpu.memory_space<vmem>>, vector<4x128xf32>,
    return
  }
  func.func @transform_0(%arg0: i32) -> i32 {
    %c0_i32 = arith.constant 0 : i32
    %c0_i32_0 = arith.constant 0 : i32
    return %c0_i32 : i32
  }
  func.func @transform_1(%arg0: i32) -> (i32, i32, i32) {
    %c0_i32 = arith.constant 0 : i32
    %c0_i32_0 = arith.constant 0 : i32
    %c0_i32_1 = arith.constant 0 : i32
    return %c0_i32, %arg0, %c0_i32_0 : i32, i32, i32
  }
  func.func @transform_2(%arg0: i32) -> (i32, i32) {
    %c0_i32 = arith.constant 0 : i32
    %c0_i32_0 = arith.constant 0 : i32
    return %arg0, %c0_i32 : i32, i32
  }
}

</mosaic_0001>

<llo_original>
// kernel: tpu_custom_call.1
$region0: #{tpu_custom_call.1}
  #allocation0 [shape = 'u32[]', space=smem, size = 0x4, offset = 0x4, fixed_abs, tag = 'smem constant byte address 0x4 - core index']
  #allocation1 [shape = 'u32[144,128]{1,0:T(1,128)}', space=vmem, size = 0x12000, scoped, tag = 'internal scratch']
  %s0 = inlined_call_operand.hbm [shape: f32[12], index: 0, kind: input, shape index: {}]
  %s1 = inlined_call_operand.hbm [shape: f32[12,4,128], index: 1, kind: input, shape index: {}]
  %s2 = inlined_call_operand.hbm [shape: f32[4,128], index: 2, kind: output, shape index: {}]
  %s3 = sld [smem:[#allocation0]]
  $region26: #{tpu_custom_call.1} parent=0
    _
  %s5 = ssub.s32 1, %s3
  %s6 = scalar_select 0, %s5, %s3
  $region1: #{tpu_custom_call.1} parent=0
    #allocation2 [shape = 'u8[512]{0}', space=smem, size = 0x200, scoped, tag = 'input window, operand 0, single buffered']
    #allocation3 [shape = 's32[1]{0}', space=sflag, size = 0x4, scoped, tag = 'scoped memory for tpu_custom_call.1']
    #allocation4 [shape = 's32[1]{0}', space=sflag, size = 0x4, scoped, tag = 'scoped memory for tpu_custom_call.1']
    #allocation5 [shape = 's32[1]{0}', space=sflag, size = 0x4, scoped, tag = 'scoped memory for tpu_custom_call.1']
    #allocation6 [shape = 'u8[24576]{0}', space=vmem, size = 0x6000, scoped, tag = 'input window, operand 1, single buffered']
    #allocation7 [shape = 'u8[2048]{0}', space=vmem, size = 0x800, scoped, tag = 'output window, operand 0, single buffered']
    %7 = vsyncpa [#allocation5], 0
    %8 = vsyncpa [#allocation3], 0
    %9 = vsyncpa [#allocation4], 0
    // Predicated region
    $region2: #{tpu_custom_call.1} parent=1 // pred_check
      _
    $region3: #{tpu_custom_call.1} parent=1 // pred_check_branch
      %11 = sbr.rel (0) target = $region5
    $region4: #{tpu_custom_call.1} parent=1 // pred_region
      %s13 = ssub.s32 16, 16
      %14 = vsyncadd [#allocation5], %s13
      %17 = dma.hbm_to_smem %s0, 16, [#allocation2], [#allocation5]
    $region5: #{tpu_custom_call.1} parent=1 // pred_fallthru
      _
    // Predicated region
    $region6: #{tpu_custom_call.1} parent=1 // pred_check
      _
    $region7: #{tpu_custom_call.1} parent=1 // pred_check_branch
      %19 = sbr.rel (0) target = $region9
    $region8: #{tpu_custom_call.1} parent=1 // pred_region
      %s21 = ssub.s32 768, 768
      %22 = vsyncadd [#allocation3], %s21
      %s23 = sshll.u32 [#allocation6], 4
      %s24 = int_to_ptr.vmem [resolvable:$true] %s23
      %29 = dma.hbm_to_vmem [thread:$0]  %s1, 768, %s24, [#allocation3], 64, 64, 4
    $region9: #{tpu_custom_call.1} parent=1 // pred_fallthru
      _
    // Predicated region
    $region10: #{tpu_custom_call.1} parent=1 // pred_check
      _
    $region11: #{tpu_custom_call.1} parent=1 // pred_check_branch
      %31 = sbr.rel (0) target = $region13
    $region12: #{tpu_custom_call.1} parent=1 // pred_region
      %32 = dma.done [#allocation5], 16
    $region13: #{tpu_custom_call.1} parent=1 // pred_fallthru
      _
    // Predicated region
    $region14: #{tpu_custom_call.1} parent=1 // pred_check
      _
    $region15: #{tpu_custom_call.1} parent=1 // pred_check_branch
      %34 = sbr.rel (0) target = $region17
    $region16: #{tpu_custom_call.1} parent=1 // pred_region
      %35 = dma.done [#allocation3], 768
    $region17: #{tpu_custom_call.1} parent=1 // pred_fallthru
      _
    %36 = sfence
    %v37 = vld [vmem:[#allocation6] sm:$0xf]
    %s38 = sld [smem:[#allocation2]]
    %v39 = vstv %s38
    %v40 = vmul.f32 %v37, %v39
    %s41 = scalar_lea.vmem [#allocation6], 4
    %v42 = vld [vmem:[%s41] sm:$0xf]
    %s43 = sld [smem:[#allocation2 + $0x1]]
    %v44 = vstv %s43
    %v45 = vmul.f32 %v42, %v44
    %v46 = vadd.f32 %v40, %v45
    %s47 = scalar_lea.vmem [#allocation6], 8
    %v48 = vld [vmem:[%s47] sm:$0xf]
    %s49 = sld [smem:[#allocation2 + $0x2]]
    %v50 = vstv %s49
    %v51 = vmul.f32 %v48, %v50
    %v52 = vadd.f32 %v46, %v51
    %s53 = scalar_lea.vmem [#allocation6], 12
    %v54 = vld [vmem:[%s53] sm:$0xf]
    %s55 = sld [smem:[#allocation2 + $0x3]]
    %v56 = vstv %s55
    %v57 = vmul.f32 %v54, %v56
    %v58 = vadd.f32 %v52, %v57
    %s59 = scalar_lea.vmem [#allocation6], 16
    %v60 = vld [vmem:[%s59] sm:$0xf]
    %s61 = sld [smem:[#allocation2 + $0x4]]
    %v62 = vstv %s61
    %v63 = vmul.f32 %v60, %v62
    %v64 = vadd.f32 %v58, %v63
    %s65 = scalar_lea.vmem [#allocation6], 20
    %v66 = vld [vmem:[%s65] sm:$0xf]
    %s67 = sld [smem:[#allocation2 + $0x5]]
    %v68 = vstv %s67
    %v69 = vmul.f32 %v66, %v68
    %v70 = vadd.f32 %v64, %v69
    %s71 = scalar_lea.vmem [#allocation6], 24
    %v72 = vld [vmem:[%s71] sm:$0xf]
    %s73 = sld [smem:[#allocation2 + $0x6]]
    %v74 = vstv %s73
    %v75 = vmul.f32 %v72, %v74
    %v76 = vadd.f32 %v70, %v75
    %s77 = scalar_lea.vmem [#allocation6], 28
    %v78 = vld [vmem:[%s77] sm:$0xf]
    %s79 = sld [smem:[#allocation2 + $0x7]]
    %v80 = vstv %s79
    %v81 = vmul.f32 %v78, %v80
    %v82 = vadd.f32 %v76, %v81
    %s83 = scalar_lea.vmem [#allocation6], 32
    %v84 = vld [vmem:[%s83] sm:$0xf]
    %s85 = sld [smem:[#allocation2 + $0x8]]
    %v86 = vstv %s85
    %v87 = vmul.f32 %v84, %v86
    %v88 = vadd.f32 %v82, %v87
    %s89 = scalar_lea.vmem [#allocation6], 36
    %v90 = vld [vmem:[%s89] sm:$0xf]
    %s91 = sld [smem:[#allocation2 + $0x9]]
    %v92 = vstv %s91
    %v93 = vmul.f32 %v90, %v92
    %v94 = vadd.f32 %v88, %v93
    %s95 = scalar_lea.vmem [#allocation6], 40
    %v96 = vld [vmem:[%s95] sm:$0xf]
    %s97 = sld [smem:[#allocation2 + $0xa]]
    %v98 = vstv %s97
    %v99 = vmul.f32 %v96, %v98
    %v100 = vadd.f32 %v94, %v99
    %s101 = scalar_lea.vmem [#allocation6], 44
    %v102 = vld [vmem:[%s101] sm:$0xf]
    %s103 = sld [smem:[#allocation2 + $0xb]]
    %v104 = vstv %s103
    %v105 = vmul.f32 %v102, %v104
    %v106 = vadd.f32 %v100, %v105
    %107 = vst [vmem:[#allocation7] sm:$0xf] %v106
    // Predicated region
    $region18: #{tpu_custom_call.1} parent=1 // pred_check
      _
    $region19: #{tpu_custom_call.1} parent=1 // pred_check_branch
      %109 = sbr.rel (0) target = $region21
    $region20: #{tpu_custom_call.1} parent=1 // pred_region
      %s111 = ssub.s32 64, 64
      %112 = vsyncadd [#allocation4], %s111
      %s114 = sshll.u32 [#allocation7], 4
      %s115 = int_to_ptr.vmem [resolvable:$true] %s114
      %117 = dma.vmem_to_hbm [thread:$0]  %s115, 64, %s2, [#allocation4]
    $region21: #{tpu_custom_call.1} parent=1 // pred_fallthru
      _
    // Predicated region
    $region22: #{tpu_custom_call.1} parent=1 // pred_check
      _
    $region23: #{tpu_custom_call.1} parent=1 // pred_check_branch
      %119 = sbr.rel (0) target = $region25
    $region24: #{tpu_custom_call.1} parent=1 // pred_region
      %120 = dma.done [#allocation4], 64
    $region25: #{tpu_custom_call.1} parent=1 // pred_fallthru
      _
    %121 = vsyncpa [#allocation3], 1
    %122 = vsyncpa [#allocation4], 1
    %123 = vsyncpa [#allocation5], 1

</llo_original>
